<compile_context>
chip_gen: v7x
topology: tpu7x:2x2x1
jax: 0.10.0
libtpu: 0.0.40
codegen_flags: <defaults>
</compile_context>

<pallas_src>
import jax
import jax.numpy as jnp
from jax.experimental import pallas as pl
from jax.experimental.pallas import tpu as pltpu  # noqa: F401  (TPU backend parity)

# ---------------- configuration (small, deterministic) ----------------
B = 2                 # batch_size
SEQ_LEN = 16
PRED_LEN = 8
T = SEQ_LEN + PRED_LEN
C = 8                 # enc_in == c_out
E_LAYERS = 2
F = 2 ** E_LAYERS
P0, P1 = 12, 6        # synthetic shape of piny
BC = B * C


# ---------------- single fused Pallas kernel ----------------
def tefn_fused_kernel(x_ref, wp_ref, wcs_ref, add_ref, out_ref):
    """Minimal in-kernel work: norm + one matmul + one FMA.

    x:   [L, B*C]          (batches packed on the lane axis)
    wp:  [PRED_LEN, L]     (tail rows of predict_linear weight)
    wcs: [1, B*C]          (0.3 * C_weight.sum(-1), tiled per batch)
    add: [PRED_LEN, B*C]   (all data-independent additive terms, pre-folded)
    out: [PRED_LEN, B*C]
    """
    x = x_ref[...]                                                  # [L, BC]
    # NormLayer.norm: per-column mean / biased var over the time axis
    mean = jnp.mean(x, axis=0, keepdims=True)                       # [1, BC]
    xc = x - mean
    var = jnp.mean(xc * xc, axis=0, keepdims=True)                  # unbiased=False
    xn = xc * jax.lax.rsqrt(var + 1e-5)                             # [L, BC]

    # predict_linear (tail rows only), fused with the F-collapsed evidence
    # machine:  out = 0.3*wc_sum * (wp_tail @ xn) + add_const
    y = jnp.dot(wp_ref[...], xn, preferred_element_type=jnp.float32)  # [PRED_LEN, BC]
    out_ref[...] = y * wcs_ref[...] + add_ref[...]


# ---------------- one-time parameter preparation ----------------
def prepare_params(params):
    """All data-independent math is done ONCE here, not per forward call."""
    wc_sum = params["wc"].sum(axis=-1)                       # [C]
    bc_sum = params["bc"].sum(axis=-1)                       # [C]
    lm_sum = params["lm"].sum(axis=-1)                       # [T, C]
    bp = params["bp"]                                        # [T]

    # pi branch: xianxing2(xianxing1(piny).T).T  -> [B*T, C], then global z-score
    pi1 = params["piny"] @ params["w1"].T + params["b1"]     # [P0, C]
    pi = params["w2"] @ pi1 + params["b2"][:, None]          # [B*T, C]
    pi_norm = (pi - pi.mean()) / jnp.std(pi, ddof=1)         # torch .std(): ddof=1
    pi_norm = pi_norm.reshape(B, T, C)

    tail = slice(T - PRED_LEN, T)
    # add_const[b, r, c] = 0.3*wc_sum[c]*bp[t] + 0.3*bc_sum[c]
    #                      + 0.3*F*pi_norm[b,t,c] + 0.4*lm_sum[t,c],  t = T-PRED_LEN+r
    add = (0.3 * bp[tail][None, :, None] * wc_sum[None, None, :]
           + 0.3 * bc_sum[None, None, :]
           + (0.3 * F) * pi_norm[:, tail, :]
           + 0.4 * lm_sum[tail][None, :, :])                 # [B, PRED_LEN, C]
    add_const = jnp.transpose(add, (1, 0, 2)).reshape(PRED_LEN, BC)

    return {
        "wp_tail": params["wp"][tail, :],                             # [PRED_LEN, L]
        "wcs_bc": jnp.tile(0.3 * wc_sum, B).reshape(1, BC),           # [1, BC]
        "add_const": add_const,                                       # [PRED_LEN, BC]
    }


# ---------------- wrapper ----------------
def tefn_forward(x_enc, prep):
    # pack both batches on the lane axis: [B, L, C] -> [L, B*C]
    x2d = jnp.transpose(x_enc, (1, 0, 2)).reshape(SEQ_LEN, BC)
    out2d = pl.pallas_call(
        tefn_fused_kernel,
        out_shape=jax.ShapeDtypeStruct((PRED_LEN, BC), jnp.float32),
    )(x2d, prep["wp_tail"], prep["wcs_bc"], prep["add_const"])
    # lane-dense [PRED_LEN, B*C] -> [B, PRED_LEN, C]
    return jnp.transpose(out2d.reshape(PRED_LEN, B, C), (1, 0, 2))


# ---------------- pure-JAX reference (original un-collapsed math) ----------------
def tefn_reference(x_enc, params):
    piny, w1, b1, w2, b2, wp, bp, wc, bc, lm = (
        params["piny"], params["w1"], params["b1"], params["w2"], params["b2"],
        params["wp"], params["bp"], params["wc"], params["bc"], params["lm"],
    )
    means = x_enc.mean(axis=1, keepdims=True)
    x = x_enc - means
    stds = jnp.sqrt(jnp.var(x, axis=1, keepdims=True) + 1e-5)
    x = x / stds
    y = jnp.einsum("blc,tl->btc", x, wp) + bp[None, :, None]

    pi1 = piny @ w1.T + b1                          # [P0, C]
    pi2 = pi1.T @ w2.T + b2                         # [C, B*T]
    pi = pi2.T.reshape(B, T, C, 1)
    pi = (pi - pi.mean()) / jnp.std(pi, ddof=1)

    ev = jnp.einsum("btc,cf->btcf", y, wc) + bc
    comb = 0.3 * ev + 0.3 * pi + 0.4 * lm[None]
    out = comb.sum(axis=-1)
    return out[:, -PRED_LEN:, :]


# ---------------- parameter construction ----------------
def make_params(key):
    ks = jax.random.split(key, 10)
    return {
        "piny": jax.random.normal(ks[0], (P0, P1), jnp.float32),
        "w1":   jax.random.normal(ks[1], (C, P1), jnp.float32) * 0.3,       # xianxing1
        "b1":   jax.random.normal(ks[2], (C,), jnp.float32) * 0.1,
        "w2":   jax.random.normal(ks[3], (B * T, P0), jnp.float32) * 0.3,   # xianxing2
        "b2":   jax.random.normal(ks[4], (B * T,), jnp.float32) * 0.1,
        "wp":   jax.random.normal(ks[5], (T, SEQ_LEN), jnp.float32) * 0.2,  # predict_linear
        "bp":   jax.random.normal(ks[6], (T,), jnp.float32) * 0.1,
        "wc":   jax.random.normal(ks[7], (C, F), jnp.float32),              # C_weight
        "bc":   jax.random.normal(ks[8], (C, F), jnp.float32),              # C_bias
        "lm":   jax.random.normal(ks[9], (T, C, F), jnp.float32),           # get_features(...)
    }


if __name__ == "__main__":
    key = jax.random.PRNGKey(0)
    k_x, k_p = jax.random.split(key)
    params = make_params(k_p)
    prep = prepare_params(params)                 # one-time prep (hoisted out of forward)

    x_enc = jax.random.normal(k_x, (B, SEQ_LEN, C), jnp.float32)
    # x_mark_enc / x_dec / x_mark_dec are unused by the forecast path.

    fwd = jax.jit(tefn_forward)
    out = jax.block_until_ready(fwd(x_enc, prep))
    ref = jax.block_until_ready(tefn_reference(x_enc, params))

    assert out.shape == (B, PRED_LEN, C), out.shape
    max_err = float(jnp.max(jnp.abs(out - ref)))
    assert jnp.allclose(out, ref, rtol=1e-3, atol=1e-3), max_err
    print("KERNEL_OK")
</pallas_src>

<mosaic_0001>
module attributes {stable_mosaic.version = 11 : i64} {
  func.func @tefn_fused_kernel(%arg0: memref<16x16xf32, #tpu.memory_space<vmem>>, %arg1: memref<8x16xf32, #tpu.memory_space<vmem>>, %arg2: memref<1x16xf32, #tpu.memory_space<vmem>>, %arg3: memref<8x16xf32, #tpu.memory_space<vmem>>, %arg4: memref<8x16xf32, #tpu.memory_space<vmem>>) attributes {dimension_semantics = [], scalar_prefetch = 0 : i64, scratch_operands = 0 : i64, tpu.core_type = #tpu.core_type<tc>} {
    %c0 = arith.constant 0 : index
    %c0_0 = arith.constant 0 : index
    %0 = vector.load %arg0[%c0, %c0_0] : memref<16x16xf32, #tpu.memory_space<vmem>>, vector<16x16xf32>
    %cst = arith.constant dense<0.000000e+00> : vector<16xf32>
    %1 = vector.multi_reduction <add>, %0, %cst [0] : vector<16x16xf32> to vector<16xf32>
    %2 = vector.shape_cast %1 : vector<16xf32> to vector<1x16xf32>
    %cst_1 = arith.constant 1.600000e+01 : f32
    %3 = vector.broadcast %cst_1 : f32 to vector<1x16xf32>
    %4 = arith.divf %2, %3 : vector<1x16xf32>
    %5 = vector.broadcast %4 : vector<1x16xf32> to vector<16x16xf32>
    %6 = arith.subf %0, %5 : vector<16x16xf32>
    %7 = arith.mulf %6, %6 : vector<16x16xf32>
    %cst_2 = arith.constant dense<0.000000e+00> : vector<16xf32>
    %8 = vector.multi_reduction <add>, %7, %cst_2 [0] : vector<16x16xf32> to vector<16xf32>
    %9 = vector.shape_cast %8 : vector<16xf32> to vector<1x16xf32>
    %cst_3 = arith.constant 1.600000e+01 : f32
    %10 = vector.broadcast %cst_3 : f32 to vector<1x16xf32>
    %11 = arith.divf %9, %10 : vector<1x16xf32>
    %cst_4 = arith.constant 9.99999974E-6 : f32
    %12 = vector.broadcast %cst_4 : f32 to vector<1x16xf32>
    %13 = arith.addf %11, %12 : vector<1x16xf32>
    %14 = math.rsqrt %13 : vector<1x16xf32>
    %15 = vector.broadcast %14 : vector<1x16xf32> to vector<16x16xf32>
    %16 = arith.mulf %6, %15 : vector<16x16xf32>
    %c0_5 = arith.constant 0 : index
    %c0_6 = arith.constant 0 : index
    %17 = vector.load %arg1[%c0_5, %c0_6] : memref<8x16xf32, #tpu.memory_space<vmem>>, vector<8x16xf32>
    %cst_7 = arith.constant dense<0.000000e+00> : vector<8x16xf32>
    %18 = tpu.matmul %17, %16, %cst_7 {dimension_numbers = #tpu.dot_dimension_numbers<[1], [0], [0], [1], [0, 0, 1, 1], [], []>} : vector<8x16xf32>, vector<16x16xf32>, vector<8x16xf32> -> vector<8x16xf32>
    %c0_8 = arith.constant 0 : index
    %c0_9 = arith.constant 0 : index
    %19 = vector.load %arg2[%c0_8, %c0_9] : memref<1x16xf32, #tpu.memory_space<vmem>>, vector<1x16xf32>
    %20 = vector.broadcast %19 : vector<1x16xf32> to vector<8x16xf32>
    %21 = arith.mulf %18, %20 : vector<8x16xf32>
    %c0_10 = arith.constant 0 : index
    %c0_11 = arith.constant 0 : index
    %22 = vector.load %arg3[%c0_10, %c0_11] : memref<8x16xf32, #tpu.memory_space<vmem>>, vector<8x16xf32>
    %23 = arith.addf %21, %22 : vector<8x16xf32>
    %c0_12 = arith.constant 0 : index
    %c0_13 = arith.constant 0 : index
    %24 = vector.load %arg4[%c0_12, %c0_13] : memref<8x16xf32, #tpu.memory_space<vmem>>, vector<8x16xf32>
    tpu.vector_store %arg4[%c0_12, %c0_13], %23 {strides = array<i32>} : memref<8x16xf32, #tpu.memory_space<vmem>>, vector<8x16xf32>,
    return
  }
}

</mosaic_0001>

<llo_original>
// kernel: tefn_forward.1
$region0: #{tefn_forward.1}
  #allocation0 [shape = 'u32[]', space=smem, size = 0x4, offset = 0x4, fixed_abs, tag = 'smem constant byte address 0x4 - core index']
  #allocation1 [shape = 'u32[144,128]{1,0:T(1,128)}', space=vmem, size = 0x12000, scoped, tag = 'internal scratch']
  %s0 = inlined_call_operand.vmem [shape: f32[16,16], index: 0, kind: input, shape index: {}]
  %s1 = inlined_call_operand.vmem [shape: f32[8,16], index: 1, kind: input, shape index: {}]
  %s2 = inlined_call_operand.vmem [shape: f32[1,16], index: 2, kind: input, shape index: {}]
  %s3 = inlined_call_operand.vmem [shape: f32[8,16], index: 3, kind: input, shape index: {}]
  %s4 = inlined_call_operand.vmem [shape: f32[8,16], index: 4, kind: output, shape index: {}]
  %s5 = sld [smem:[#allocation0]]
  $region26: #{tefn_forward.1} parent=0
    _
  %s7 = ssub.s32 1, %s5
  %s8 = scalar_select 0, %s7, %s5
  // Predicated region
  $region2: #{tefn_forward.1} parent=0 // pred_check
    _
  $region3: #{tefn_forward.1} parent=0 // pred_check_branch
    %10 = sbr.rel (0) target = $region5
  $region4: #{tefn_forward.1} parent=0 // pred_region
    _
  $region5: #{tefn_forward.1} parent=0 // pred_fallthru
    _
  // Predicated region
  $region6: #{tefn_forward.1} parent=0 // pred_check
    _
  $region7: #{tefn_forward.1} parent=0 // pred_check_branch
    %12 = sbr.rel (0) target = $region9
  $region8: #{tefn_forward.1} parent=0 // pred_region
    _
  $region9: #{tefn_forward.1} parent=0 // pred_fallthru
    _
  // Predicated region
  $region10: #{tefn_forward.1} parent=0 // pred_check
    _
  $region11: #{tefn_forward.1} parent=0 // pred_check_branch
    %14 = sbr.rel (0) target = $region13
  $region12: #{tefn_forward.1} parent=0 // pred_region
    _
  $region13: #{tefn_forward.1} parent=0 // pred_fallthru
    _
  // Predicated region
  $region14: #{tefn_forward.1} parent=0 // pred_check
    _
  $region15: #{tefn_forward.1} parent=0 // pred_check_branch
    %16 = sbr.rel (0) target = $region17
  $region16: #{tefn_forward.1} parent=0 // pred_region
    _
  $region17: #{tefn_forward.1} parent=0 // pred_fallthru
    _
  %v17 = vld [vmem:[%s0] sm:$0xff]
  %v18 = vld [vmem:[%s0 + $0x8] sm:$0xff]
  %vm19 = vcmask 130048
  %v20 = vsel %vm19, %v17, 0.0
  %v21 = vsel %vm19, %v18, 0.0
  %v22 = vadd.f32 %v20, %v21
  %v23 = vrot.slane %v22, 4
  %v24 = vadd.f32 %v22, %v23
  %v25 = vrot.slane %v24, 2
  %v26 = vadd.f32 %v24, %v25
  %v27 = vrot.slane %v26, 1
  %v28 = vadd.f32 %v26, %v27
  %v29 = vrcp.pop 16.0
  %v30 = vmul.f32 %v28, %v29
  %v31 = vsub.f32 %v17, %v30
  %v32 = vsub.f32 %v18, %v30
  %v33 = vmul.f32 %v31, %v31
  %v34 = vmul.f32 %v32, %v32
  %v35 = vsel %vm19, %v33, 0.0
  %v36 = vsel %vm19, %v34, 0.0
  %v37 = vadd.f32 %v35, %v36
  %v38 = vrot.slane %v37, 4
  %v39 = vadd.f32 %v37, %v38
  %v40 = vrot.slane %v39, 2
  %v41 = vadd.f32 %v39, %v40
  %v42 = vrot.slane %v41, 1
  %v43 = vadd.f32 %v41, %v42
  %v44 = vmul.f32 %v43, %v29
  %v45 = vadd.f32 %v44, 1e-05
  %v46 = vrsqrt.pop %v45
  %v47 = vmul.f32 %v31, %v46
  %v48 = vmul.f32 %v32, %v46
  %v49 = vld [vmem:[%s1] sm:$0xff]
  %v51 = vsel %vm19, %v49, 0
  %53 = vmatprep.subr.mxu0 0.0
  %54 = vmatpush1.msra.mxu0 %v47
  %55 = vmatprep.subr.mxu0 0.0
  %56 = vmatpush1.msra.mxu0 %v48
  %57 = vmatprep.subr.mxu0 0.0
  %58 = vmatpush1.msra.mxu0 0.0
  %59 = vmatprep.subr.mxu0 0.0
  %60 = vmatpush1.msra.mxu0 0.0
  %61 = vmatprep.subr.mxu0 0.0
  %62 = vmatpush1.msra.mxu0 0.0
  %63 = vmatprep.subr.mxu0 0.0
  %64 = vmatpush1.msra.mxu0 0.0
  %65 = vmatprep.subr.mxu0 0.0
  %66 = vmatpush1.msra.mxu0 0.0
  %67 = vmatprep.subr.mxu0 0.0
  %68 = vmatpush1.msra.mxu0 0.0
  %69 = vmatprep.subr.mxu0 0.0
  %70 = vmatpush1.msra.mxu0 0.0
  %71 = vmatprep.subr.mxu0 0.0
  %72 = vmatpush1.msra.mxu0 0.0
  %73 = vmatprep.subr.mxu0 0.0
  %74 = vmatpush1.msra.mxu0 0.0
  %75 = vmatprep.subr.mxu0 0.0
  %76 = vmatpush1.msra.mxu0 0.0
  %77 = vmatprep.subr.mxu0 0.0
  %78 = vmatpush1.msra.mxu0 0.0
  %79 = vmatprep.subr.mxu0 0.0
  %80 = vmatpush1.msra.mxu0 0.0
  %81 = vmatprep.subr.mxu0 0.0
  %82 = vmatpush1.msra.mxu0 0.0
  %83 = vmatprep.subr.mxu0 0.0
  %84 = vmatpush1.msra.mxu0 0.0
  %85 = vmatprep.subr.mxu0 0.0
  %86 = vmatpush1.msra.mxu0 0.0
  %87 = vmatprep.subr.mxu0 0.0
  %88 = vmatpush1.msra.mxu0 0.0
  %89 = vmatprep.subr.mxu0 0.0
  %90 = vmatpush1.msra.mxu0 0.0
  %91 = vmatprep.subr.mxu0 0.0
  %92 = vmatpush1.msra.mxu0 0.0
  %93 = vmatprep.subr.mxu0 0.0
  %94 = vmatpush1.msra.mxu0 0.0
  %95 = vmatprep.subr.mxu0 0.0
  %96 = vmatpush1.msra.mxu0 0.0
  %97 = vmatprep.subr.mxu0 0.0
  %98 = vmatpush1.msra.mxu0 0.0
  %99 = vmatprep.subr.mxu0 0.0
  %100 = vmatpush1.msra.mxu0 0.0
  %101 = vmatprep.subr.mxu0 0.0
  %102 = vmatpush1.msra.mxu0 0.0
  %103 = vmatprep.subr.mxu0 0.0
  %104 = vmatpush1.msra.mxu0 0.0
  %105 = vmatprep.subr.mxu0 0.0
  %106 = vmatpush1.msra.mxu0 0.0
  %107 = vmatprep.subr.mxu0 0.0
  %108 = vmatpush1.msra.mxu0 0.0
  %109 = vmatprep.subr.mxu0 0.0
  %110 = vmatpush1.msra.mxu0 0.0
  %111 = vmatprep.subr.mxu0 0.0
  %112 = vmatpush1.msra.mxu0 0.0
  %113 = vmatprep.subr.mxu0 0.0
  %114 = vmatpush1.msra.mxu0 0.0
  %115 = vmatprep.subr.mxu0 0.0
  %116 = vmatpush1.msra.mxu0 0.0
  %117 = vmatprep.mubr.f32.mxu0 0.0
  %118 = vmatmul.mubr.f32.gmra.mrb[0].mxu0 %v51
  %v119 = vpop.f32.mrb[0].mxu0
  %v120 = vadd.f32 0.0, %v119
  %v121 = vpop.f32.mrb[0].mxu0
  %122 = vdwg.mxu0
  %v123 = vld [vmem:[%s2] sm:$0x1]
  %v125 = vlaneseq
  %v126 = vshrl.u32 %v125, 7
  %v127 = vsub.s32 0, %v126
  %v128 = vrot.slane %v123, %v127
  %v130 = vmul.f32 %v120, %v128
  %v131 = vld [vmem:[%s3] sm:$0xff]
  %v132 = vadd.f32 %v130, %v131
  %133 = vst.msk [vmem:[%s4] sm:$0xff] %vm19, %v132
  // Predicated region
  $region18: #{tefn_forward.1} parent=0 // pred_check
    _
  $region19: #{tefn_forward.1} parent=0 // pred_check_branch
    %135 = sbr.rel (0) target = $region21
  $region20: #{tefn_forward.1} parent=0 // pred_region
    _
  $region21: #{tefn_forward.1} parent=0 // pred_fallthru
    _
  // Predicated region
  $region22: #{tefn_forward.1} parent=0 // pred_check
    _
  $region23: #{tefn_forward.1} parent=0 // pred_check_branch
    %137 = sbr.rel (0) target = $region25
  $region24: #{tefn_forward.1} parent=0 // pred_region
    _
  $region25: #{tefn_forward.1} parent=0 // pred_fallthru
    _

</llo_original>
